<compile_context>
chip_gen: v6e
topology: v6e:2x2x1
jax: 0.10.0
libtpu: 0.0.40
codegen_flags: <defaults>
</compile_context>

<pallas_src>
import functools

import jax
import jax.numpy as jnp
from jax.experimental import pallas as pl
from jax.experimental.pallas import tpu as pltpu


_TARGET_BLOCK_BYTES = 2 * 1024 * 1024   # ~2 MiB/block: >=85% of HBM roofline, safe on v5e/v6e/v7x
_MAX_SAMPLES_PER_BLOCK = 8              # samples folded per grid step for small slabs


def _drop_path_kernel(scales_ref, x_ref, o_ref, *, bs):
    """Per-sample stochastic-depth scale.

    scales_ref : SMEM float32[B_padded]  scalar-prefetch; 0.0 = dropped,
                                         1/keep_prob (or 1.0) = kept
    x_ref      : VMEM (bs, tile_r, lane) or (bs, tile_f)   block of bs samples
    o_ref      : same shape as x_ref
    """
    s0 = pl.program_id(0) * bs
    # bs is a small static int (<= 8): unrolled scalar-splat multiplies.
    for i in range(bs):
        s = scales_ref[s0 + i]
        o_ref[i] = x_ref[i] * s.astype(o_ref.dtype)


def drop_path(x, *, drop_prob=0.0, scale_by_keep=True, training=True, key=None,
              donate=False, target_block_bytes=_TARGET_BLOCK_BYTES):
    """JAX/Pallas equivalent of DropPath.forward (per-sample stochastic depth).

    drop_prob / scale_by_keep / training must be static Python values.
    A fresh PRNG `key` is required whenever the random path is taken.
    Set donate=True only if the caller actually donates x (jax.jit
    donate_argnums); otherwise XLA inserts a defensive copy before the kernel.
    """
    if drop_prob == 0.0 or not training:
        return x
    if key is None:
        raise ValueError(
            "drop_path: an explicit PRNG `key` is required when training with "
            "drop_prob > 0 (matches PyTorch's fresh per-call randomness).")

    keep_prob = 1.0 - drop_prob
    B = x.shape[0]
    F = 1
    for d in x.shape[1:]:
        F *= d
    itemsize = jnp.dtype(x.dtype).itemsize

    # Per-sample scale precomputed once: kernel is a pure broadcast-multiply.
    on_val = (1.0 / keep_prob) if (scale_by_keep and keep_prob > 0.0) else 1.0
    keep = jax.random.bernoulli(key, p=keep_prob, shape=(B,))
    scales = jnp.where(keep, jnp.float32(on_val), jnp.float32(0.0))

    sub = max(8, 32 // itemsize)   # native sublane multiple: 8 f32, 16 bf16, 32 int8

    if F % 128 == 0:
        # ---- lane-dense 3-D view (B, rows, lane) -------------------------------
        lane = next(l for l in (1024, 512, 256, 128) if F % l == 0)
        rows = F // lane
        slab_bytes = F * itemsize
        if slab_bytes >= target_block_bytes:
            # Big per-sample slab: one sample per block, tile the row axis.
            bs = 1
            target_rows = max(sub, target_block_bytes // (lane * itemsize))
            if rows <= target_rows:
                tile_r = rows                              # full extent: always legal
            else:
                tile_r = max(sub, (target_rows // sub) * sub)
        else:
            # Small slab: fold several samples per block to amortize step overhead.
            bs = min(B, _MAX_SAMPLES_PER_BLOCK,
                     max(1, target_block_bytes // slab_bytes))
            tile_r = rows
        xv = x.reshape(B, rows, lane)
        block = (bs, tile_r, lane)
        grid = (pl.cdiv(B, bs), pl.cdiv(rows, tile_r))
        in_spec = pl.BlockSpec(block, lambda s, r, sc: (s, r, 0))
        out_spec = pl.BlockSpec(block, lambda s, r, sc: (s, r, 0))
    else:
        # ---- ragged feature count: 2-D (B, F) view -----------------------------
        # Tail lanes / partial blocks are handled by Pallas boundary masking in
        # the kernel; no wrapper pad + output slice (saves ~2 extra HBM passes).
        xv = x.reshape(B, F)
        bs = min(B, 8)   # dim -2 of the block: full extent (B<8) or divisible by 8
        padded_bs = max(sub, ((bs + sub - 1) // sub) * sub)
        tile_f = max(128, (target_block_bytes // (padded_bs * itemsize)) // 128 * 128)
        if tile_f >= F:
            tile_f = F                                     # full extent: always legal
        block = (bs, tile_f)
        grid = (pl.cdiv(B, bs), pl.cdiv(F, tile_f))
        in_spec = pl.BlockSpec(block, lambda s, f, sc: (s, f))
        out_spec = pl.BlockSpec(block, lambda s, f, sc: (s, f))

    # Pad the (tiny) SMEM scale vector so every folded sample-block reads
    # in-bounds even when bs does not divide B (data blocks are masked by Pallas).
    n_sample_blocks = grid[0]
    if n_sample_blocks * bs != B:
        scales = jnp.pad(scales, (0, n_sample_blocks * bs - B))

    kernel = functools.partial(_drop_path_kernel, bs=bs)
    bytes_accessed = 2 * B * F * itemsize

    out = pl.pallas_call(
        kernel,
        out_shape=jax.ShapeDtypeStruct(xv.shape, xv.dtype),
        grid_spec=pltpu.PrefetchScalarGridSpec(
            num_scalar_prefetch=1,
            grid=grid,
            in_specs=[in_spec],
            out_specs=out_spec,
        ),
        compiler_params=pltpu.CompilerParams(
            dimension_semantics=("parallel", "parallel"),
        ),
        # In-place only when the caller really donates x; operand 1 is the data
        # slab (operand 0 is the scalar-prefetch scale vector).
        input_output_aliases=({1: 0} if donate else {}),
        cost_estimate=pl.CostEstimate(
            flops=B * F, transcendentals=0, bytes_accessed=bytes_accessed),
    )(scales, xv)

    return out.reshape(x.shape)


if __name__ == "__main__":
    # Shape consistent with typical DropPath usage inside SAM2 blocks (NCHW).
    x = jax.random.normal(jax.random.PRNGKey(0), (2, 4, 16, 16), dtype=jnp.float32)

    drop_prob = 0.3
    keep_prob = 1.0 - drop_prob

    # Training path: per-sample mask, scaled by 1/keep_prob.
    y = drop_path(x, drop_prob=drop_prob, scale_by_keep=True, training=True,
                  key=jax.random.PRNGKey(1234))
    y = jax.block_until_ready(y)

    # Eval path: identity, matching the PyTorch short-circuit.
    y_eval = jax.block_until_ready(drop_path(x, drop_prob=drop_prob, training=False))
    assert jnp.allclose(y_eval, x)

    # scale_by_keep=False path: kept samples pass through unscaled.
    y_ns = jax.block_until_ready(
        drop_path(x, drop_prob=drop_prob, scale_by_keep=False, training=True,
                  key=jax.random.PRNGKey(7)))

    # donate / in-place-alias path must agree with the non-aliased result.
    y_d = jax.block_until_ready(
        drop_path(x, drop_prob=drop_prob, scale_by_keep=True, training=True,
                  key=jax.random.PRNGKey(1234), donate=True))
    assert jnp.allclose(y_d, y)

    # Each training sample is either all-zeros or exactly x * scale.
    for out, scaled_val in ((y, 1.0 / keep_prob), (y_ns, 1.0)):
        for b in range(x.shape[0]):
            zeroed = bool(jnp.allclose(out[b], 0.0))
            scaled = bool(jnp.allclose(out[b], x[b] * scaled_val, rtol=1e-5, atol=1e-5))
            assert zeroed or scaled, "per-sample DropPath semantics violated"

    print("KERNEL_OK")
</pallas_src>

<mosaic_0001>
module attributes {stable_mosaic.version = 11 : i64} {
  func.func @_drop_path_kernel(%arg0: i32, %arg1: i32, %arg2: memref<2xf32, #tpu.memory_space<smem>>, %arg3: memref<2x1x1024xf32, #tpu.memory_space<vmem>>, %arg4: memref<2x1x1024xf32, #tpu.memory_space<vmem>>) attributes {dimension_semantics = [#tpu.dimension_semantics<parallel>, #tpu.dimension_semantics<parallel>], iteration_bounds = array<i64: 1, 1>, scalar_prefetch = 1 : i64, scratch_operands = 0 : i64, tpu.core_type = #tpu.core_type<tc>, window_params = [{transform_indices = @transform_0, window_bounds = array<i64: 2, 1, 1024>}, {transform_indices = @transform_1, window_bounds = array<i64: 2, 1, 1024>}]} {
    %c2_i32 = arith.constant 2 : i32
    %0 = arith.muli %arg0, %c2_i32 : i32
    %c0_i32 = arith.constant 0 : i32
    %1 = arith.addi %0, %c0_i32 : i32
    %2 = arith.index_cast %1 : i32 to index
    %3 = memref.load %arg2[%2] : memref<2xf32, #tpu.memory_space<smem>>
    %c0 = arith.constant 0 : index
    %c0_0 = arith.constant 0 : index
    %c0_1 = arith.constant 0 : index
    %4 = vector.load %arg3[%c0, %c0_0, %c0_1] : memref<2x1x1024xf32, #tpu.memory_space<vmem>>, vector<1x1x1024xf32>
    %5 = vector.shape_cast %4 : vector<1x1x1024xf32> to vector<1x1024xf32>
    %6 = vector.broadcast %3 : f32 to vector<1x1024xf32>
    %7 = arith.mulf %5, %6 : vector<1x1024xf32>
    %c0_2 = arith.constant 0 : index
    %c0_3 = arith.constant 0 : index
    %c0_4 = arith.constant 0 : index
    %8 = vector.load %arg4[%c0_2, %c0_3, %c0_4] : memref<2x1x1024xf32, #tpu.memory_space<vmem>>, vector<1x1x1024xf32>
    %9 = vector.shape_cast %8 : vector<1x1x1024xf32> to vector<1x1024xf32>
    %10 = vector.shape_cast %7 : vector<1x1024xf32> to vector<1x1x1024xf32>
    tpu.vector_store %arg4[%c0_2, %c0_3, %c0_4], %10 {strides = array<i32>} : memref<2x1x1024xf32, #tpu.memory_space<vmem>>, vector<1x1x1024xf32>,
    %c1_i32 = arith.constant 1 : i32
    %11 = arith.addi %0, %c1_i32 : i32
    %12 = arith.index_cast %11 : i32 to index
    %13 = memref.load %arg2[%12] : memref<2xf32, #tpu.memory_space<smem>>
    %c1 = arith.constant 1 : index
    %c0_5 = arith.constant 0 : index
    %c0_6 = arith.constant 0 : index
    %14 = vector.load %arg3[%c1, %c0_5, %c0_6] : memref<2x1x1024xf32, #tpu.memory_space<vmem>>, vector<1x1x1024xf32>
    %15 = vector.shape_cast %14 : vector<1x1x1024xf32> to vector<1x1024xf32>
    %16 = vector.broadcast %13 : f32 to vector<1x1024xf32>
    %17 = arith.mulf %15, %16 : vector<1x1024xf32>
    %c1_7 = arith.constant 1 : index
    %c0_8 = arith.constant 0 : index
    %c0_9 = arith.constant 0 : index
    %18 = vector.load %arg4[%c1_7, %c0_8, %c0_9] : memref<2x1x1024xf32, #tpu.memory_space<vmem>>, vector<1x1x1024xf32>
    %19 = vector.shape_cast %18 : vector<1x1x1024xf32> to vector<1x1024xf32>
    %20 = vector.shape_cast %17 : vector<1x1024xf32> to vector<1x1x1024xf32>
    tpu.vector_store %arg4[%c1_7, %c0_8, %c0_9], %20 {strides = array<i32>} : memref<2x1x1024xf32, #tpu.memory_space<vmem>>, vector<1x1x1024xf32>,
    return
  }
  func.func @transform_0(%arg0: i32, %arg1: i32, %arg2: memref<2xf32, #tpu.memory_space<smem>>) -> (i32, i32, i32) {
    %c0_i32 = arith.constant 0 : i32
    %c0_i32_0 = arith.constant 0 : i32
    return %arg0, %arg1, %c0_i32 : i32, i32, i32
  }
  func.func @transform_1(%arg0: i32, %arg1: i32, %arg2: memref<2xf32, #tpu.memory_space<smem>>) -> (i32, i32, i32) {
    %c0_i32 = arith.constant 0 : i32
    %c0_i32_0 = arith.constant 0 : i32
    return %arg0, %arg1, %c0_i32 : i32, i32, i32
  }
}

</mosaic_0001>

<llo_original>
// kernel: tpu_custom_call.1
$region0: #{tpu_custom_call.1}
  #allocation0 [shape = 'u32[]', space=smem, size = 0x4, offset = 0x4, fixed_abs, tag = 'smem constant byte address 0x4 - core index']
  #allocation1 [shape = 'u32[144,128]{1,0:T(1,128)}', space=vmem, size = 0x12000, scoped, tag = 'internal scratch']
  #allocation2 [shape = 's32[1]{0}', space=sflag, size = 0x4, scoped, tag = 'scoped memory for tpu_custom_call.1']
  #allocation3 [shape = 'u8[512]{0}', space=smem, size = 0x200, scoped, tag = 'prefetched SMEM operand 0']
  %s0 = inlined_call_operand.hbm [shape: f32[2], index: 0, kind: input, shape index: {}]
  %s1 = inlined_call_operand.hbm [shape: f32[2,1,1024], index: 1, kind: input, shape index: {}]
  %s2 = inlined_call_operand.hbm [shape: f32[2,1,1024], index: 2, kind: output, shape index: {}]
  %s3 = sld [smem:[#allocation0]]
  $region18: #{tpu_custom_call.1} parent=0
    _
  %s5 = ssub.s32 1, %s3
  %s6 = scalar_select 0, %s5, %s3
  %8 = dma.hbm_to_smem %s0, 16, [#allocation3], [#allocation2]
  %9 = dma.done [#allocation2], 16
  %10 = sfence
  $region1: #{tpu_custom_call.1} parent=0
    #allocation4 [shape = 'u8[8192]{0}', space=vmem, size = 0x2000, scoped, tag = 'input window, operand 1, single buffered']
    #allocation5 [shape = 's32[1]{0}', space=sflag, size = 0x4, scoped, tag = 'scoped memory for tpu_custom_call.1']
    #allocation6 [shape = 's32[1]{0}', space=sflag, size = 0x4, scoped, tag = 'scoped memory for tpu_custom_call.1']
    #allocation7 [shape = 'u8[8192]{0}', space=vmem, size = 0x2000, scoped, tag = 'output window, operand 0, single buffered']
    %11 = vsyncpa [#allocation5], 0
    %12 = vsyncpa [#allocation6], 0
    // Predicated region
    $region2: #{tpu_custom_call.1} parent=1 // pred_check
      _
    $region3: #{tpu_custom_call.1} parent=1 // pred_check_branch
      %14 = sbr.rel (0) target = $region5
    $region4: #{tpu_custom_call.1} parent=1 // pred_region
      %s16 = ssub.s32 256, 256
      %17 = vsyncadd [#allocation5], %s16
      %s18 = sshll.u32 [#allocation4], 4
      %s19 = int_to_ptr.vmem [resolvable:$true] %s18
      %24 = dma.hbm_to_vmem [thread:$0]  %s1, 256, %s19, [#allocation5], 128, 128, 8
    $region5: #{tpu_custom_call.1} parent=1 // pred_fallthru
      _
    // Predicated region
    $region6: #{tpu_custom_call.1} parent=1 // pred_check
      _
    $region7: #{tpu_custom_call.1} parent=1 // pred_check_branch
      %26 = sbr.rel (0) target = $region9
    $region8: #{tpu_custom_call.1} parent=1 // pred_region
      %27 = dma.done [#allocation5], 256
    $region9: #{tpu_custom_call.1} parent=1 // pred_fallthru
      _
    %s28 = smul.u32 0, 2
    %s29 = sld [smem:[#allocation3 + %s28]]
    %v30 = vld [vmem:[#allocation4] sm:$0xff]
    %v31 = vstv %s29
    %v32 = vmul.f32 %v30, %v31
    %33 = vst [vmem:[#allocation7] sm:$0xff] %v32
    %s34 = sadd.s32 %s28, 1
    %s35 = sld [smem:[#allocation3 + %s34]]
    %s36 = scalar_lea.vmem [#allocation4], 8
    %v37 = vld [vmem:[%s36] sm:$0xff]
    %v38 = vstv %s35
    %v39 = vmul.f32 %v37, %v38
    %s40 = scalar_lea.vmem [#allocation7], 8
    %41 = vst [vmem:[%s40] sm:$0xff] %v39
    // Predicated region
    $region10: #{tpu_custom_call.1} parent=1 // pred_check
      _
    $region11: #{tpu_custom_call.1} parent=1 // pred_check_branch
      %43 = sbr.rel (0) target = $region13
    $region12: #{tpu_custom_call.1} parent=1 // pred_region
      %s45 = ssub.s32 256, 256
      %46 = vsyncadd [#allocation6], %s45
      %s47 = sshll.u32 [#allocation7], 4
      %s48 = int_to_ptr.vmem [resolvable:$true] %s47
      %53 = dma.vmem_to_hbm [thread:$0]  %s48, 256, %s2, [#allocation6], 128, 128, 8
    $region13: #{tpu_custom_call.1} parent=1 // pred_fallthru
      _
    // Predicated region
    $region14: #{tpu_custom_call.1} parent=1 // pred_check
      _
    $region15: #{tpu_custom_call.1} parent=1 // pred_check_branch
      %55 = sbr.rel (0) target = $region17
    $region16: #{tpu_custom_call.1} parent=1 // pred_region
      %56 = dma.done [#allocation6], 256
    $region17: #{tpu_custom_call.1} parent=1 // pred_fallthru
      _
    %57 = vsyncpa [#allocation5], 1
    %58 = vsyncpa [#allocation6], 1

</llo_original>
